<compile_context>
chip_gen: v7x
topology: tpu7x:2x2x1
jax: 0.10.0
libtpu: 0.0.40
codegen_flags: <defaults>
</compile_context>

<pallas_src>
import functools

import jax
import jax.numpy as jnp
from jax import lax
from jax.experimental import pallas as pl
from jax.experimental.pallas import tpu as pltpu


def _vmem_capacity_bytes():
    """Best-effort per-core VMEM capacity; conservative fallback (v7x = 64 MiB)."""
    try:
        info = pltpu.get_tpu_info()
        cap = getattr(info, "vmem_capacity_bytes", None)
        if cap:
            return int(cap)
    except Exception:
        pass
    return 64 << 20


def _pick_rows_tile(H, T, res_in_bytes, res_out_bytes, vmem_cap):
    """Largest row tile (multiple of 32) fitting ~half of VMEM double-buffered."""
    per_row = H * (4 + res_in_bytes + res_out_bytes + 1)  # i32 in + res in + res out + i8 out
    budget = vmem_cap // 2                                # headroom: weight/bias, scratch
    rows = budget // (2 * per_row)                        # x2: double buffering
    rows = (rows // 32) * 32
    rows = max(32, min(rows, 1024))
    t_pad32 = ((T + 31) // 32) * 32
    rows = min(rows, max(32, t_pad32))
    return rows, per_row


def _dq_add_ln_q_kernel(scale_ref, inp_i32_ref, res_ref, w_ref, b_ref,
                        res_out_ref, q_out_ref, *, eps):
    scale = scale_ref[0]  # f32 scalar from SMEM

    # Dequantize + residual add, fp32 accumulation (residual upcast in-kernel).
    x = inp_i32_ref[...].astype(jnp.float32) * scale + res_ref[...].astype(jnp.float32)
    res_out_ref[...] = x.astype(res_out_ref.dtype)

    # LayerNorm over last (lane) dim -- one-pass statistics.
    h = x.shape[-1]
    inv_h = jnp.float32(1.0 / h)
    s1 = jnp.sum(x, axis=-1, keepdims=True)
    s2 = jnp.sum(x * x, axis=-1, keepdims=True)
    mean = s1 * inv_h
    var = jnp.maximum(s2 * inv_h - mean * mean, 0.0)
    y = (x - mean) * lax.rsqrt(var + eps)
    y = y * w_ref[...] + b_ref[...]

    # Quantize: round-to-nearest-even, clamp to int8 range, full-tile store.
    q_out_ref[...] = jnp.clip(jnp.round(y), -128.0, 127.0).astype(jnp.int8)


def dq_add_layernorm_q(input_int32, residual_input_fp, weight, bias, *,
                       input_scale=1.0, eps=1e-5, rows_tile=None,
                       residual_out_dtype=jnp.float32):
    """Fused dequant + residual-add + LayerNorm + int8-quantize.

    input_int32:       [..., H] int32
    residual_input_fp: [..., H] float (any float dtype; upcast in-kernel)
    weight, bias:      [H] float32
    Returns (residual_out [..., H] residual_out_dtype, ln_out_int8 [..., H] int8).
    """
    orig_shape = residual_input_fp.shape
    H = orig_shape[-1]
    assert H % 128 == 0, "hidden dim must be a multiple of 128 (lane width)"

    x_i = input_int32.reshape(-1, H)
    x_r = residual_input_fp.reshape(-1, H)          # native dtype, no wrapper cast
    T = x_i.shape[0]

    res_in_bytes = jnp.dtype(x_r.dtype).itemsize
    res_out_bytes = jnp.dtype(residual_out_dtype).itemsize
    vmem_cap = _vmem_capacity_bytes()

    if rows_tile is None:
        rows_tile, per_row = _pick_rows_tile(H, T, res_in_bytes, res_out_bytes, vmem_cap)
    else:
        assert rows_tile % 32 == 0, "rows_tile must be a multiple of 32"
        per_row = H * (4 + res_in_bytes + res_out_bytes + 1)

    # Pad token count up to a multiple of rows_tile (padded rows are all-zero;
    # LayerNorm on them is finite thanks to eps and the result is sliced off).
    T_pad = pl.cdiv(T, rows_tile) * rows_tile
    if T_pad != T:
        pad = T_pad - T
        x_i = jnp.pad(x_i, ((0, pad), (0, 0)))
        x_r = jnp.pad(x_r, ((0, pad), (0, 0)))

    # Explicit scoped-VMEM limit so large tiles actually double-buffer.
    needed = 2 * rows_tile * per_row + 4 * H * 4 * 2 + (4 << 20)
    vmem_limit = max(needed, 32 << 20)
    vmem_limit = min(vmem_limit, vmem_cap - (2 << 20))

    w2 = weight.astype(jnp.float32).reshape(1, H)
    b2 = bias.astype(jnp.float32).reshape(1, H)
    scale_arr = jnp.asarray([input_scale], dtype=jnp.float32)

    kernel = functools.partial(_dq_add_ln_q_kernel, eps=float(eps))

    grid = (T_pad // rows_tile,)
    res_out, q_out = pl.pallas_call(
        kernel,
        out_shape=(
            jax.ShapeDtypeStruct((T_pad, H), residual_out_dtype),
            jax.ShapeDtypeStruct((T_pad, H), jnp.int8),
        ),
        grid_spec=pltpu.PrefetchScalarGridSpec(
            num_scalar_prefetch=0,
            grid=grid,
            in_specs=[
                pl.BlockSpec(memory_space=pltpu.MemorySpace.SMEM),  # scale (1,) f32
                pl.BlockSpec((rows_tile, H), lambda i: (i, 0)),     # int32 input
                pl.BlockSpec((rows_tile, H), lambda i: (i, 0)),     # residual (native dtype)
                pl.BlockSpec((1, H), lambda i: (0, 0)),             # weight
                pl.BlockSpec((1, H), lambda i: (0, 0)),             # bias
            ],
            out_specs=[
                pl.BlockSpec((rows_tile, H), lambda i: (i, 0)),     # residual out
                pl.BlockSpec((rows_tile, H), lambda i: (i, 0)),     # ln out (int8)
            ],
        ),
        compiler_params=pltpu.CompilerParams(
            dimension_semantics=("parallel",),
            vmem_limit_bytes=int(vmem_limit)),
    )(scale_arr, x_i, x_r, w2, b2)

    if T_pad != T:
        res_out = res_out[:T]
        q_out = q_out[:T]
    return res_out.reshape(orig_shape), q_out.reshape(orig_shape)


class DQAddLayerNormQ:
    """JAX mirror of triton_int.nn.fused.DQ_Add_LayerNorm_Q."""

    def __init__(self, dim, eps=1e-5):
        self.input_scale = 1.0
        self.eps = eps
        self.weight = jnp.ones((dim,), dtype=jnp.float32)
        self.bias = jnp.zeros((dim,), dtype=jnp.float32)

    def __call__(self, residual_input_fp, input_int32):
        return dq_add_layernorm_q(
            input_int32, residual_input_fp, self.weight, self.bias,
            input_scale=self.input_scale, eps=self.eps)


if __name__ == "__main__":
    B, L, H = 2, 32, 128   # small shapes: batch=2, seq=32, hidden=128
    key = jax.random.PRNGKey(0)
    k1, k2 = jax.random.split(key)

    residual_fp = jax.random.normal(k1, (B, L, H), dtype=jnp.float32)
    input_i32 = jax.random.randint(k2, (B, L, H), minval=-512, maxval=512,
                                   dtype=jnp.int32)

    mod = DQAddLayerNormQ(H, eps=1e-5)
    mod.input_scale = 0.004  # synthetic dequant scale (set post-init as in torch-int)

    residual_out, ln_int8 = mod(residual_fp, input_i32)
    jax.block_until_ready(residual_out)
    jax.block_until_ready(ln_int8)

    # Pure-JAX reference check.
    x_ref = residual_fp + input_i32.astype(jnp.float32) * mod.input_scale
    mean = jnp.mean(x_ref, axis=-1, keepdims=True)
    var = jnp.mean((x_ref - mean) ** 2, axis=-1, keepdims=True)
    ln_ref = (x_ref - mean) * lax.rsqrt(var + mod.eps) * mod.weight + mod.bias
    q_ref = jnp.clip(jnp.round(ln_ref), -128, 127).astype(jnp.int8)

    assert residual_out.dtype == jnp.float32
    assert jnp.allclose(residual_out, x_ref, atol=1e-5, rtol=1e-5)
    assert int(jnp.max(jnp.abs(ln_int8.astype(jnp.int32) -
                               q_ref.astype(jnp.int32)))) <= 1  # off-by-1 at rounding ties
    print("KERNEL_OK")
</pallas_src>

<mosaic_0001>
module attributes {stable_mosaic.version = 11 : i64} {
  func.func @_dq_add_ln_q_kernel(%arg0: i32, %arg1: memref<1xf32, #tpu.memory_space<smem>>, %arg2: memref<64x128xi32, #tpu.memory_space<vmem>>, %arg3: memref<64x128xf32, #tpu.memory_space<vmem>>, %arg4: memref<1x128xf32, #tpu.memory_space<vmem>>, %arg5: memref<1x128xf32, #tpu.memory_space<vmem>>, %arg6: memref<64x128xf32, #tpu.memory_space<vmem>>, %arg7: memref<64x128xi8, #tpu.memory_space<vmem>>) attributes {dimension_semantics = [#tpu.dimension_semantics<parallel>], iteration_bounds = array<i64: 1>, scalar_prefetch = 0 : i64, scratch_operands = 0 : i64, tpu.core_type = #tpu.core_type<tc>, window_params = [{transform_indices = @transform_0, window_bounds = array<i64: 1>}, {transform_indices = @transform_1, window_bounds = array<i64: 64, 128>}, {transform_indices = @transform_2, window_bounds = array<i64: 64, 128>}, {pipeline_mode = #tpu.pipeline_mode<synchronous>, transform_indices = @transform_3, window_bounds = array<i64: 1, 128>}, {pipeline_mode = #tpu.pipeline_mode<synchronous>, transform_indices = @transform_4, window_bounds = array<i64: 1, 128>}, {transform_indices = @transform_5, window_bounds = array<i64: 64, 128>}, {transform_indices = @transform_6, window_bounds = array<i64: 64, 128>}]} {
    %c0 = arith.constant 0 : index
    %0 = memref.load %arg1[%c0] : memref<1xf32, #tpu.memory_space<smem>>
    %c0_0 = arith.constant 0 : index
    %c0_1 = arith.constant 0 : index
    %1 = vector.load %arg2[%c0_0, %c0_1] : memref<64x128xi32, #tpu.memory_space<vmem>>, vector<64x128xi32>
    %2 = arith.sitofp %1 : vector<64x128xi32> to vector<64x128xf32>
    %3 = vector.broadcast %0 : f32 to vector<64x128xf32>
    %4 = arith.mulf %2, %3 : vector<64x128xf32>
    %c0_2 = arith.constant 0 : index
    %c0_3 = arith.constant 0 : index
    %5 = vector.load %arg3[%c0_2, %c0_3] : memref<64x128xf32, #tpu.memory_space<vmem>>, vector<64x128xf32>
    %6 = arith.addf %4, %5 : vector<64x128xf32>
    %c0_4 = arith.constant 0 : index
    %c0_5 = arith.constant 0 : index
    %7 = vector.load %arg6[%c0_4, %c0_5] : memref<64x128xf32, #tpu.memory_space<vmem>>, vector<64x128xf32>
    tpu.vector_store %arg6[%c0_4, %c0_5], %6 {strides = array<i32>} : memref<64x128xf32, #tpu.memory_space<vmem>>, vector<64x128xf32>,
    %cst = arith.constant dense<0.000000e+00> : vector<64xf32>
    %8 = vector.multi_reduction <add>, %6, %cst [1] : vector<64x128xf32> to vector<64xf32>
    %9 = vector.shape_cast %8 : vector<64xf32> to vector<64x1xf32>
    %10 = arith.mulf %6, %6 : vector<64x128xf32>
    %cst_6 = arith.constant dense<0.000000e+00> : vector<64xf32>
    %11 = vector.multi_reduction <add>, %10, %cst_6 [1] : vector<64x128xf32> to vector<64xf32>
    %12 = vector.shape_cast %11 : vector<64xf32> to vector<64x1xf32>
    %cst_7 = arith.constant 7.812500e-03 : f32
    %13 = vector.broadcast %cst_7 : f32 to vector<64x1xf32>
    %14 = arith.mulf %9, %13 : vector<64x1xf32>
    %cst_8 = arith.constant 7.812500e-03 : f32
    %15 = vector.broadcast %cst_8 : f32 to vector<64x1xf32>
    %16 = arith.mulf %12, %15 : vector<64x1xf32>
    %17 = arith.mulf %14, %14 : vector<64x1xf32>
    %18 = arith.subf %16, %17 : vector<64x1xf32>
    %cst_9 = arith.constant 0.000000e+00 : f32
    %19 = vector.broadcast %cst_9 : f32 to vector<64x1xf32>
    %20 = arith.maximumf %18, %19 : vector<64x1xf32>
    %21 = vector.broadcast %14 : vector<64x1xf32> to vector<64x128xf32>
    %22 = arith.subf %6, %21 : vector<64x128xf32>
    %cst_10 = arith.constant 9.99999974E-6 : f32
    %23 = vector.broadcast %cst_10 : f32 to vector<64x1xf32>
    %24 = arith.addf %20, %23 : vector<64x1xf32>
    %25 = math.rsqrt %24 : vector<64x1xf32>
    %26 = vector.broadcast %25 : vector<64x1xf32> to vector<64x128xf32>
    %27 = arith.mulf %22, %26 : vector<64x128xf32>
    %c0_11 = arith.constant 0 : index
    %c0_12 = arith.constant 0 : index
    %28 = vector.load %arg4[%c0_11, %c0_12] : memref<1x128xf32, #tpu.memory_space<vmem>>, vector<1x128xf32>
    %29 = vector.broadcast %28 : vector<1x128xf32> to vector<64x128xf32>
    %30 = arith.mulf %27, %29 : vector<64x128xf32>
    %c0_13 = arith.constant 0 : index
    %c0_14 = arith.constant 0 : index
    %31 = vector.load %arg5[%c0_13, %c0_14] : memref<1x128xf32, #tpu.memory_space<vmem>>, vector<1x128xf32>
    %32 = vector.broadcast %31 : vector<1x128xf32> to vector<64x128xf32>
    %33 = arith.addf %30, %32 : vector<64x128xf32>
    %34 = math.roundeven %33 : vector<64x128xf32>
    %cst_15 = arith.constant -1.280000e+02 : f32
    %cst_16 = arith.constant 1.270000e+02 : f32
    %35 = vector.broadcast %cst_15 : f32 to vector<64x128xf32>
    %36 = arith.maximumf %35, %34 : vector<64x128xf32>
    %37 = vector.broadcast %cst_16 : f32 to vector<64x128xf32>
    %38 = arith.minimumf %37, %36 : vector<64x128xf32>
    %39 = arith.fptosi %38 : vector<64x128xf32> to vector<64x128xi8>
    %c0_17 = arith.constant 0 : index
    %c0_18 = arith.constant 0 : index
    %40 = vector.load %arg7[%c0_17, %c0_18] : memref<64x128xi8, #tpu.memory_space<vmem>>, vector<64x128xi8>
    tpu.vector_store %arg7[%c0_17, %c0_18], %39 {strides = array<i32>} : memref<64x128xi8, #tpu.memory_space<vmem>>, vector<64x128xi8>,
    return
  }
  func.func @transform_0(%arg0: i32) -> i32 {
    %c0_i32 = arith.constant 0 : i32
    %c0_i32_0 = arith.constant 0 : i32
    return %c0_i32 : i32
  }
  func.func @transform_1(%arg0: i32) -> (i32, i32) {
    %c0_i32 = arith.constant 0 : i32
    %c0_i32_0 = arith.constant 0 : i32
    return %arg0, %c0_i32 : i32, i32
  }
  func.func @transform_2(%arg0: i32) -> (i32, i32) {
    %c0_i32 = arith.constant 0 : i32
    %c0_i32_0 = arith.constant 0 : i32
    return %arg0, %c0_i32 : i32, i32
  }
  func.func @transform_3(%arg0: i32) -> (i32, i32) {
    %c0_i32 = arith.constant 0 : i32
    %c0_i32_0 = arith.constant 0 : i32
    %c0_i32_1 = arith.constant 0 : i32
    return %c0_i32, %c0_i32_0 : i32, i32
  }
  func.func @transform_4(%arg0: i32) -> (i32, i32) {
    %c0_i32 = arith.constant 0 : i32
    %c0_i32_0 = arith.constant 0 : i32
    %c0_i32_1 = arith.constant 0 : i32
    return %c0_i32, %c0_i32_0 : i32, i32
  }
  func.func @transform_5(%arg0: i32) -> (i32, i32) {
    %c0_i32 = arith.constant 0 : i32
    %c0_i32_0 = arith.constant 0 : i32
    return %arg0, %c0_i32 : i32, i32
  }
  func.func @transform_6(%arg0: i32) -> (i32, i32) {
    %c0_i32 = arith.constant 0 : i32
    %c0_i32_0 = arith.constant 0 : i32
    return %arg0, %c0_i32 : i32, i32
  }
}

</mosaic_0001>

<llo_original>
// kernel: tpu_custom_call.1
$region0: #{tpu_custom_call.1}
  #allocation0 [shape = 'u32[]', space=smem, size = 0x4, offset = 0x4, fixed_abs, tag = 'smem constant byte address 0x4 - core index']
  #allocation1 [shape = 'u32[144,128]{1,0:T(1,128)}', space=vmem, size = 0x12000, scoped, tag = 'internal scratch']
  #allocation2 [shape = 'f32[1]{0:T(128)S(6)}', space=smem, size = 0x200, scoped, tag = 'scoped memory for tpu_custom_call.1']
  %s0 = inlined_call_operand.<no memory space> [shape: f32[1], index: 0, kind: input, shape index: {}]
  %s1 = inlined_call_operand.hbm [shape: s32[64,128], index: 1, kind: input, shape index: {}]
  %s2 = inlined_call_operand.hbm [shape: f32[64,128], index: 2, kind: input, shape index: {}]
  %s3 = inlined_call_operand.vmem [shape: f32[1,128], index: 3, kind: input, shape index: {}]
  %s4 = inlined_call_operand.vmem [shape: f32[1,128], index: 4, kind: input, shape index: {}]
  %s5 = inlined_call_operand.hbm [shape: f32[64,128], index: 5, kind: output, shape index: {0}]
  %s6 = inlined_call_operand.hbm [shape: s8[64,128], index: 6, kind: output, shape index: {1}]
  %7 = xla_tuple %s5, %s6
  %s8 = sld [smem:[#allocation0]]
  $region46: #{tpu_custom_call.1} parent=0
    _
  %s10 = ssub.s32 1, %s8
  %s11 = scalar_select 0, %s10, %s8
  %12 = sst [smem:[#allocation2]] %s0
  $region1: #{tpu_custom_call.1} parent=0
    #allocation3 [shape = 'u8[32768]{0}', space=vmem, size = 0x8000, scoped, tag = 'input window, operand 1, single buffered']
    #allocation4 [shape = 's32[1]{0}', space=sflag, size = 0x4, scoped, tag = 'scoped memory for tpu_custom_call.1']
    #allocation5 [shape = 's32[1]{0}', space=sflag, size = 0x4, scoped, tag = 'scoped memory for tpu_custom_call.1']
    #allocation6 [shape = 'u8[32768]{0}', space=vmem, size = 0x8000, scoped, tag = 'input window, operand 2, single buffered']
    #allocation7 [shape = 's32[1]{0}', space=sflag, size = 0x4, scoped, tag = 'scoped memory for tpu_custom_call.1']
    #allocation8 [shape = 'u8[32768]{0}', space=vmem, size = 0x8000, scoped, tag = 'output window, operand 0, single buffered']
    #allocation9 [shape = 'u8[8192]{0}', space=vmem, size = 0x2000, scoped, tag = 'output window, operand 1, single buffered']
    #allocation10 [shape = 's32[1]{0}', space=sflag, size = 0x4, scoped, tag = 'scoped memory for tpu_custom_call.1']
    %13 = vsyncpa [#allocation4], 0
    %14 = vsyncpa [#allocation7], 0
    %15 = vsyncpa [#allocation5], 0
    %16 = vsyncpa [#allocation10], 0
    // Predicated region
    $region2: #{tpu_custom_call.1} parent=1 // pred_check
      _
    $region3: #{tpu_custom_call.1} parent=1 // pred_check_branch
      %18 = sbr.rel (0) target = $region5
    $region4: #{tpu_custom_call.1} parent=1 // pred_region
      _
    $region5: #{tpu_custom_call.1} parent=1 // pred_fallthru
      _
    // Predicated region
    $region6: #{tpu_custom_call.1} parent=1 // pred_check
      _
    $region7: #{tpu_custom_call.1} parent=1 // pred_check_branch
      %20 = sbr.rel (0) target = $region9
    $region8: #{tpu_custom_call.1} parent=1 // pred_region
      %s22 = ssub.s32 1024, 1024
      %23 = vsyncadd [#allocation4], %s22
      %s24 = sshll.u32 [#allocation3], 4
      %s25 = int_to_ptr.vmem [resolvable:$true] %s24
      %30 = dma.hbm_to_vmem [thread:$0]  %s1, 1024, %s25, [#allocation4], 128, 128, 8
    $region9: #{tpu_custom_call.1} parent=1 // pred_fallthru
      _
    // Predicated region
    $region10: #{tpu_custom_call.1} parent=1 // pred_check
      _
    $region11: #{tpu_custom_call.1} parent=1 // pred_check_branch
      %32 = sbr.rel (0) target = $region13
    $region12: #{tpu_custom_call.1} parent=1 // pred_region
      %s34 = ssub.s32 1024, 1024
      %35 = vsyncadd [#allocation7], %s34
      %s36 = sshll.u32 [#allocation6], 4
      %s37 = int_to_ptr.vmem [resolvable:$true] %s36
      %42 = dma.hbm_to_vmem [thread:$0]  %s2, 1024, %s37, [#allocation7], 128, 128, 8
    $region13: #{tpu_custom_call.1} parent=1 // pred_fallthru
      _
    // Predicated region
    $region14: #{tpu_custom_call.1} parent=1 // pred_check
      _
    $region15: #{tpu_custom_call.1} parent=1 // pred_check_branch
      %44 = sbr.rel (0) target = $region17
    $region16: #{tpu_custom_call.1} parent=1 // pred_region
      _
    $region17: #{tpu_custom_call.1} parent=1 // pred_fallthru
      _
    // Predicated region
    $region18: #{tpu_custom_call.1} parent=1 // pred_check
      _
    $region19: #{tpu_custom_call.1} parent=1 // pred_check_branch
      %46 = sbr.rel (0) target = $region21
    $region20: #{tpu_custom_call.1} parent=1 // pred_region
      _
    $region21: #{tpu_custom_call.1} parent=1 // pred_fallthru
      _
    // Predicated region
    $region22: #{tpu_custom_call.1} parent=1 // pred_check
      _
    $region23: #{tpu_custom_call.1} parent=1 // pred_check_branch
      %48 = sbr.rel (0) target = $region25
    $region24: #{tpu_custom_call.1} parent=1 // pred_region
      %49 = dma.done [#allocation4], 1024
    $region25: #{tpu_custom_call.1} parent=1 // pred_fallthru
      _
    // Predicated region
    $region26: #{tpu_custom_call.1} parent=1 // pred_check
      _
    $region27: #{tpu_custom_call.1} parent=1 // pred_check_branch
      %51 = sbr.rel (0) target = $region29
    $region28: #{tpu_custom_call.1} parent=1 // pred_region
      %52 = dma.done [#allocation7], 1024
    $region29: #{tpu_custom_call.1} parent=1 // pred_fallthru
      _
    %s53 = sld [smem:[#allocation2]]
    %v54 = vld [vmem:[#allocation3] sm:$0xff]
    %v55 = vld [vmem:[#allocation3 + $0x8] sm:$0xff]
    %v56 = vld [vmem:[#allocation3 + $0x10] sm:$0xff]
    %v57 = vld [vmem:[#allocation3 + $0x18] sm:$0xff]
    %v58 = vld [vmem:[#allocation3 + $0x20] sm:$0xff]
    %v59 = vld [vmem:[#allocation3 + $0x28] sm:$0xff]
    %v60 = vld [vmem:[#allocation3 + $0x30] sm:$0xff]
    %v61 = vld [vmem:[#allocation3 + $0x38] sm:$0xff]
    %v62 = vcvt.s32.f32 %v54
    %v63 = vcvt.s32.f32 %v55
    %v64 = vcvt.s32.f32 %v56
    %v65 = vcvt.s32.f32 %v57
    %v66 = vcvt.s32.f32 %v58
    %v67 = vcvt.s32.f32 %v59
    %v68 = vcvt.s32.f32 %v60
    %v69 = vcvt.s32.f32 %v61
    %v70 = vstv %s53
    %v71 = vmul.f32 %v62, %v70
    %v72 = vmul.f32 %v63, %v70
    %v73 = vmul.f32 %v64, %v70
    %v74 = vmul.f32 %v65, %v70
    %v75 = vmul.f32 %v66, %v70
    %v76 = vmul.f32 %v67, %v70
    %v77 = vmul.f32 %v68, %v70
    %v78 = vmul.f32 %v69, %v70
    %v79 = vld [vmem:[#allocation6] sm:$0xff]
    %v80 = vld [vmem:[#allocation6 + $0x8] sm:$0xff]
    %v81 = vld [vmem:[#allocation6 + $0x10] sm:$0xff]
    %v82 = vld [vmem:[#allocation6 + $0x18] sm:$0xff]
    %v83 = vld [vmem:[#allocation6 + $0x20] sm:$0xff]
    %v84 = vld [vmem:[#allocation6 + $0x28] sm:$0xff]
    %v85 = vld [vmem:[#allocation6 + $0x30] sm:$0xff]
    %v86 = vld [vmem:[#allocation6 + $0x38] sm:$0xff]
    %v87 = vadd.f32 %v71, %v79
    %v88 = vadd.f32 %v72, %v80
    %v89 = vadd.f32 %v73, %v81
    %v90 = vadd.f32 %v74, %v82
    %v91 = vadd.f32 %v75, %v83
    %v92 = vadd.f32 %v76, %v84
    %v93 = vadd.f32 %v77, %v85
    %v94 = vadd.f32 %v78, %v86
    %95 = vst [vmem:[#allocation8] sm:$0xff] %v87
    %96 = vst [vmem:[#allocation8 + $0x8] sm:$0xff] %v88
    %97 = vst [vmem:[#allocation8 + $0x10] sm:$0xff] %v89
    %98 = vst [vmem:[#allocation8 + $0x18] sm:$0xff] %v90
    %99 = vst [vmem:[#allocation8 + $0x20] sm:$0xff] %v91
    %100 = vst [vmem:[#allocation8 + $0x28] sm:$0xff] %v92
    %101 = vst [vmem:[#allocation8 + $0x30] sm:$0xff] %v93
    %102 = vst [vmem:[#allocation8 + $0x38] sm:$0xff] %v94
    %103 = vadd.xlane.f32.xlu0 %v87
    %v104 = vpop.xlane.xlu0 %103
    %105 = vadd.xlane.f32.xlu0 %v88
    %v106 = vpop.xlane.xlu0 %105
    %107 = vadd.xlane.f32.xlu0 %v89
    %v108 = vpop.xlane.xlu0 %107
    %109 = vadd.xlane.f32.xlu0 %v90
    %v110 = vpop.xlane.xlu0 %109
    %111 = vadd.xlane.f32.xlu0 %v91
    %v112 = vpop.xlane.xlu0 %111
    %113 = vadd.xlane.f32.xlu0 %v92
    %v114 = vpop.xlane.xlu0 %113
    %115 = vadd.xlane.f32.xlu0 %v93
    %v116 = vpop.xlane.xlu0 %115
    %117 = vadd.xlane.f32.xlu0 %v94
    %v118 = vpop.xlane.xlu0 %117
    %v119 = vmul.f32 %v87, %v87
    %v120 = vmul.f32 %v88, %v88
    %v121 = vmul.f32 %v89, %v89
    %v122 = vmul.f32 %v90, %v90
    %v123 = vmul.f32 %v91, %v91
    %v124 = vmul.f32 %v92, %v92
    %v125 = vmul.f32 %v93, %v93
    %v126 = vmul.f32 %v94, %v94
    %127 = vadd.xlane.f32.xlu0 %v119
    %v128 = vpop.xlane.xlu0 %127
    %129 = vadd.xlane.f32.xlu0 %v120
    %v130 = vpop.xlane.xlu0 %129
    %131 = vadd.xlane.f32.xlu0 %v121
    %v132 = vpop.xlane.xlu0 %131
    %133 = vadd.xlane.f32.xlu0 %v122
    %v134 = vpop.xlane.xlu0 %133
    %135 = vadd.xlane.f32.xlu0 %v123
    %v136 = vpop.xlane.xlu0 %135
    %137 = vadd.xlane.f32.xlu0 %v124
    %v138 = vpop.xlane.xlu0 %137
    %139 = vadd.xlane.f32.xlu0 %v125
    %v140 = vpop.xlane.xlu0 %139
    %141 = vadd.xlane.f32.xlu0 %v126
    %v142 = vpop.xlane.xlu0 %141
    %v143 = vmul.f32 %v104, 0.0078125
    %v144 = vmul.f32 %v106, 0.0078125
    %v145 = vmul.f32 %v108, 0.0078125
    %v146 = vmul.f32 %v110, 0.0078125
    %v147 = vmul.f32 %v112, 0.0078125
    %v148 = vmul.f32 %v114, 0.0078125
    %v149 = vmul.f32 %v116, 0.0078125
    %v150 = vmul.f32 %v118, 0.0078125
    %v151 = vmul.f32 %v128, 0.0078125
    %v152 = vmul.f32 %v130, 0.0078125
    %v153 = vmul.f32 %v132, 0.0078125
    %v154 = vmul.f32 %v134, 0.0078125
    %v155 = vmul.f32 %v136, 0.0078125
    %v156 = vmul.f32 %v138, 0.0078125
    %v157 = vmul.f32 %v140, 0.0078125
    %v158 = vmul.f32 %v142, 0.0078125
    %v159 = vmul.f32 %v143, %v143
    %v160 = vmul.f32 %v144, %v144
    %v161 = vmul.f32 %v145, %v145
    %v162 = vmul.f32 %v146, %v146
    %v163 = vmul.f32 %v147, %v147
    %v164 = vmul.f32 %v148, %v148
    %v165 = vmul.f32 %v149, %v149
    %v166 = vmul.f32 %v150, %v150
    %v167 = vsub.f32 %v151, %v159
    %v168 = vsub.f32 %v152, %v160
    %v169 = vsub.f32 %v153, %v161
    %v170 = vsub.f32 %v154, %v162
    %v171 = vsub.f32 %v155, %v163
    %v172 = vsub.f32 %v156, %v164
    %v173 = vsub.f32 %v157, %v165
    %v174 = vsub.f32 %v158, %v166
    %v175 = vmax.f32 %v167, 0.0
    %v176 = vmax.f32 %v168, 0.0
    %v177 = vmax.f32 %v169, 0.0
    %v178 = vmax.f32 %v170, 0.0
    %v179 = vmax.f32 %v171, 0.0
    %v180 = vmax.f32 %v172, 0.0
    %v181 = vmax.f32 %v173, 0.0
    %v182 = vmax.f32 %v174, 0.0
    %v183 = vsub.f32 %v87, %v143
    %v184 = vsub.f32 %v88, %v144
    %v185 = vsub.f32 %v89, %v145
    %v186 = vsub.f32 %v90, %v146
    %v187 = vsub.f32 %v91, %v147
    %v188 = vsub.f32 %v92, %v148
    %v189 = vsub.f32 %v93, %v149
    %v190 = vsub.f32 %v94, %v150
    %v191 = vadd.f32 %v175, 1e-05
    %v192 = vadd.f32 %v176, 1e-05
    %v193 = vadd.f32 %v177, 1e-05
    %v194 = vadd.f32 %v178, 1e-05
    %v195 = vadd.f32 %v179, 1e-05
    %v196 = vadd.f32 %v180, 1e-05
    %v197 = vadd.f32 %v181, 1e-05
    %v198 = vadd.f32 %v182, 1e-05
    %v199 = vrsqrt.pop %v191
    %v200 = vrsqrt.pop %v192
    %v201 = vrsqrt.pop %v193
    %v202 = vrsqrt.pop %v194
    %v203 = vrsqrt.pop %v195
    %v204 = vrsqrt.pop %v196
    %v205 = vrsqrt.pop %v197
    %v206 = vrsqrt.pop %v198
    %v207 = vmul.f32 %v183, %v199
    %v208 = vmul.f32 %v184, %v200
    %v209 = vmul.f32 %v185, %v201
    %v210 = vmul.f32 %v186, %v202
    %v211 = vmul.f32 %v187, %v203
    %v212 = vmul.f32 %v188, %v204
    %v213 = vmul.f32 %v189, %v205
    %v214 = vmul.f32 %v190, %v206
    %v215 = vld [vmem:[%s3] sm:$0x1]
    %v217 = vlaneseq
    %v218 = vshrl.u32 %v217, 7
    %v219 = vsub.s32 0, %v218
    %v220 = vrot.slane %v215, %v219
    %v222 = vmul.f32 %v207, %v220
    %v223 = vmul.f32 %v208, %v220
    %v224 = vmul.f32 %v209, %v220
    %v225 = vmul.f32 %v210, %v220
    %v226 = vmul.f32 %v211, %v220
    %v227 = vmul.f32 %v212, %v220
    %v228 = vmul.f32 %v213, %v220
    %v229 = vmul.f32 %v214, %v220
    %v230 = vld [vmem:[%s4] sm:$0x1]
    %v232 = vlaneseq
    %v233 = vshrl.u32 %v232, 7
    %v234 = vsub.s32 0, %v233
    %v235 = vrot.slane %v230, %v234
    %v237 = vadd.f32 %v222, %v235
    %v238 = vadd.f32 %v223, %v235
    %v239 = vadd.f32 %v224, %v235
    %v240 = vadd.f32 %v225, %v235
    %v241 = vadd.f32 %v226, %v235
    %v242 = vadd.f32 %v227, %v235
    %v243 = vadd.f32 %v228, %v235
    %v244 = vadd.f32 %v229, %v235
    %v245 = vround.ne.pseudo %v237
    %v246 = vround.ne.pseudo %v238
    %v247 = vround.ne.pseudo %v239
    %v248 = vround.ne.pseudo %v240
    %v249 = vround.ne.pseudo %v241
    %v250 = vround.ne.pseudo %v242
    %v251 = vround.ne.pseudo %v243
    %v252 = vround.ne.pseudo %v244
    %v253 = vmax.f32 %v245, -128.0
    %v254 = vmax.f32 %v246, -128.0
    %v255 = vmax.f32 %v247, -128.0
    %v256 = vmax.f32 %v248, -128.0
    %v257 = vmax.f32 %v249, -128.0
    %v258 = vmax.f32 %v250, -128.0
    %v259 = vmax.f32 %v251, -128.0
    %v260 = vmax.f32 %v252, -128.0
    %v261 = vmin.f32 %v253, 127.0
    %v262 = vmin.f32 %v254, 127.0
    %v263 = vmin.f32 %v255, 127.0
    %v264 = vmin.f32 %v256, 127.0
    %v265 = vmin.f32 %v257, 127.0
    %v266 = vmin.f32 %v258, 127.0
    %v267 = vmin.f32 %v259, 127.0
    %v268 = vmin.f32 %v260, 127.0
    %v269 = vtrunc.f32 %v261
    %v270 = vtrunc.f32 %v262
    %v271 = vtrunc.f32 %v263
    %v272 = vtrunc.f32 %v264
    %v273 = vtrunc.f32 %v265
    %v274 = vtrunc.f32 %v266
    %v275 = vtrunc.f32 %v267
    %v276 = vtrunc.f32 %v268
    %v277 = vpack.c.f32.eXmY %v269, %v270, 312
    %v281 = vpack.c.f32.eXmY %v271, %v272, 312
    %v285 = vpack.c.b8 %v281, %v277
    %v287 = vpack.c.f32.eXmY %v273, %v274, 312
    %v291 = vpack.c.f32.eXmY %v275, %v276, 312
    %v295 = vpack.c.b8 %v291, %v287
    %297 = vst [vmem:[#allocation9] sm:$0xff] %v285
    %298 = vst [vmem:[#allocation9 + $0x8] sm:$0xff] %v295
    // Predicated region
    $region30: #{tpu_custom_call.1} parent=1 // pred_check
      _
    $region31: #{tpu_custom_call.1} parent=1 // pred_check_branch
      %300 = sbr.rel (0) target = $region33
    $region32: #{tpu_custom_call.1} parent=1 // pred_region
      %s302 = ssub.s32 1024, 1024
      %303 = vsyncadd [#allocation5], %s302
      %s304 = sshll.u32 [#allocation8], 4
      %s305 = int_to_ptr.vmem [resolvable:$true] %s304
      %310 = dma.vmem_to_hbm [thread:$0]  %s305, 1024, %s5, [#allocation5], 128, 128, 8
    $region33: #{tpu_custom_call.1} parent=1 // pred_fallthru
      _
    // Predicated region
    $region34: #{tpu_custom_call.1} parent=1 // pred_check
      _
    $region35: #{tpu_custom_call.1} parent=1 // pred_check_branch
      %312 = sbr.rel (0) target = $region37
    $region36: #{tpu_custom_call.1} parent=1 // pred_region
      %s314 = ssub.s32 256, 256
      %315 = vsyncadd [#allocation10], %s314
      %s316 = sshll.u32 [#allocation9], 4
      %s317 = int_to_ptr.vmem [resolvable:$true] %s316
      %322 = dma.vmem_to_hbm [thread:$0]  %s317, 256, %s6, [#allocation10], 128, 128, 8
    $region37: #{tpu_custom_call.1} parent=1 // pred_fallthru
      _
    // Predicated region
    $region38: #{tpu_custom_call.1} parent=1 // pred_check
      _
    $region39: #{tpu_custom_call.1} parent=1 // pred_check_branch
      %324 = sbr.rel (0) target = $region41
    $region40: #{tpu_custom_call.1} parent=1 // pred_region
      %325 = dma.done [#allocation5], 1024
    $region41: #{tpu_custom_call.1} parent=1 // pred_fallthru
      _
    // Predicated region
    $region42: #{tpu_custom_call.1} parent=1 // pred_check
      _
    $region43: #{tpu_custom_call.1} parent=1 // pred_check_branch
      %327 = sbr.rel (0) target = $region45
    $region44: #{tpu_custom_call.1} parent=1 // pred_region
      %328 = dma.done [#allocation10], 256
    $region45: #{tpu_custom_call.1} parent=1 // pred_fallthru
      _
    %329 = vsyncpa [#allocation4], 1
    %330 = vsyncpa [#allocation7], 1
    %331 = vsyncpa [#allocation5], 1
    %332 = vsyncpa [#allocation10], 1

</llo_original>
